<compile_context>
chip_gen: v7x
topology: tpu7x:2x2x1
jax: 0.10.0
libtpu: 0.0.40
codegen_flags: <defaults>
</compile_context>

<pallas_src>
import functools
import math

import jax
import jax.numpy as jnp
from jax import lax
from jax.experimental import pallas as pl
from jax.experimental.pallas import tpu as pltpu

_LANE = 128
_SUB = 8


def _device_params():
    """Generation-aware tile budget, VMEM limit and megacore split."""
    kind = ""
    try:
        kind = jax.devices()[0].device_kind.lower()
    except Exception:
        pass
    # Conservative defaults (v5e-class: ~0.82 TB/s HBM, small scoped VMEM default).
    max_tile_bytes = 2 * 1024 * 1024
    vmem_limit = 32 * 1024 * 1024
    ncores = 1
    if "v7" in kind or "7x" in kind:
        # v7x: 2 TCs/chip, only 64 MiB VMEM/TC, ~3.2 TB/s -> bigger tiles +
        # megacore split, but keep the limit well under the 64 MiB physical cap.
        max_tile_bytes = 4 * 1024 * 1024
        vmem_limit = 48 * 1024 * 1024
        ncores = 2
    elif "v6" in kind:
        # v6e: 1 TC, 128 MiB VMEM, ~1.4 TB/s -> bigger tiles, generous limit.
        max_tile_bytes = 4 * 1024 * 1024
        vmem_limit = 64 * 1024 * 1024
    return max_tile_bytes, vmem_limit, ncores


def _plan_tiles(rows, cols, bytes_per_elem, max_tile_bytes, ncores):
    """Pick (block_rows, n_tiles, ncores): 8-aligned row tiles within budget."""
    if rows < _SUB:
        return rows, 1, 1  # tiny single full-dim tile
    budget_rows = max(_SUB,
                      (max_tile_bytes // (cols * bytes_per_elem)) // _SUB * _SUB)
    block_rows = min(budget_rows, (rows // _SUB) * _SUB)
    n_tiles = pl.cdiv(rows, block_rows)
    if ncores > 1 and n_tiles >= ncores:
        # Balance tiles across cores (grid axis 0 is "parallel").
        n_tiles = ncores * pl.cdiv(n_tiles, ncores)
        block_rows = min(_SUB * pl.cdiv(rows, _SUB * n_tiles),
                         (rows // _SUB) * _SUB)
        if (n_tiles - 1) * block_rows >= rows:
            # Degenerate split (a tile would be fully out of range): 1 core.
            ncores = 1
            block_rows = min(budget_rows, (rows // _SUB) * _SUB)
            n_tiles = pl.cdiv(rows, block_rows)
    else:
        ncores = 1
    return block_rows, n_tiles, ncores


def _dnn_loss_kernel(mel_ref, post_ref, tgt_ref, gate_x_ref, gate_y_ref,
                     mel_out_ref, post_out_ref, gate_out_ref,
                     acc1_ref, acc2_ref,
                     *, block_rows, cols, tiles_per_core, rows_valid,
                     needs_mask, unroll):
    c = pl.program_id(0)   # megacore ("parallel") axis
    i = pl.program_id(1)   # streaming ("arbitrary") axis

    @pl.when(i == 0)
    def _():
        acc1_ref[...] = jnp.zeros_like(acc1_ref)
        acc2_ref[...] = jnp.zeros_like(acc2_ref)

    if block_rows % _SUB == 0:
        # Main path: loop over (8, cols) sublane groups; live temporaries stay
        # in a few vregs instead of tile-sized VMEM intermediates.
        n_groups = block_rows // _SUB
        tile_row0 = (c * tiles_per_core + i) * block_rows
        row_iota = (lax.broadcasted_iota(jnp.int32, (_SUB, cols), 0)
                    if needs_mask else None)

        def body(g, carry):
            a1, a2 = carry
            r = pl.multiple_of(g * _SUB, _SUB)
            t = tgt_ref[pl.ds(r, _SUB), :].astype(jnp.float32)
            d1 = mel_ref[pl.ds(r, _SUB), :].astype(jnp.float32) - t
            d2 = post_ref[pl.ds(r, _SUB), :].astype(jnp.float32) - t
            s1 = d1 * d1
            s2 = d2 * d2
            if needs_mask:
                # Rows past the true row count (ragged last tile) contribute 0.
                m = row_iota < (rows_valid - (tile_row0 + r))
                s1 = jnp.where(m, s1, 0.0)
                s2 = jnp.where(m, s2, 0.0)
            return a1 + s1, a2 + s2

        zero = jnp.zeros((_SUB, cols), jnp.float32)
        a1, a2 = lax.fori_loop(0, n_groups, body, (zero, zero),
                               unroll=min(unroll, n_groups))
    else:
        # Tiny single-tile fallback (rows < 8): whole-tile expression.
        t = tgt_ref[...].astype(jnp.float32)
        d1 = mel_ref[...].astype(jnp.float32) - t
        d2 = post_ref[...].astype(jnp.float32) - t
        a1, a2 = d1 * d1, d2 * d2

    acc1_ref[...] += a1
    acc2_ref[...] += a2

    @pl.when(i == pl.num_programs(1) - 1)
    def _():
        # Single cross-lane/sublane reduce per loss, on each core's final step.
        mel_out_ref[...] = jnp.full((_SUB, _LANE), jnp.sum(acc1_ref[...]),
                                    jnp.float32)
        post_out_ref[...] = jnp.full((_SUB, _LANE), jnp.sum(acc2_ref[...]),
                                     jnp.float32)

        # Numerically stable BCE-with-logits on the tiny resident gate blocks.
        # Only core 0 contributes the gate sum; other cores write 0.
        x = gate_x_ref[...].astype(jnp.float32)
        y = gate_y_ref[...].astype(jnp.float32)
        elem = jnp.maximum(x, 0.0) - x * y + jnp.log1p(jnp.exp(-jnp.abs(x)))
        gate_sum = jnp.where(c == 0, jnp.sum(elem), 0.0)
        gate_out_ref[...] = jnp.full((_SUB, _LANE), gate_sum, jnp.float32)


@jax.jit
def dnn_loss(mel_output, mel_output_postnet, gate_output, mel_target,
             gate_target):
    n_mel = math.prod(mel_output.shape)
    n_gate = math.prod(gate_output.shape)

    max_tile_bytes, vmem_limit, ncores_req = _device_params()

    # Lane-dense flattening: widest aligned column count dividing the element
    # count; rare non-128-aligned counts get a small zero pad (MSE-neutral).
    cols = next((cw for cw in (1024, 512, 256, 128) if n_mel % cw == 0), None)
    mel_f = mel_output.reshape(-1)
    post_f = mel_output_postnet.reshape(-1)
    tgt_f = mel_target.reshape(-1)
    if cols is None:
        cols = _LANE
        pad = (-n_mel) % cols
        mel_f = jnp.pad(mel_f, (0, pad))
        post_f = jnp.pad(post_f, (0, pad))
        tgt_f = jnp.pad(tgt_f, (0, pad))
    rows = mel_f.shape[0] // cols
    mel2 = mel_f.reshape(rows, cols)
    post2 = post_f.reshape(rows, cols)
    tgt2 = tgt_f.reshape(rows, cols)

    if gate_output.ndim > 1:
        gate2_x = gate_output.reshape(-1, gate_output.shape[-1])
        gate2_y = gate_target.reshape(-1, gate_target.shape[-1])
    else:
        gate2_x = gate_output.reshape(1, -1)
        gate2_y = gate_target.reshape(1, -1)

    bpe = max(mel2.dtype.itemsize, post2.dtype.itemsize, tgt2.dtype.itemsize)
    block_rows, n_tiles, ncores = _plan_tiles(rows, cols, bpe, max_tile_bytes,
                                              ncores_req)
    tiles_per_core = n_tiles // ncores
    needs_mask = (n_tiles * block_rows != rows)
    acc_rows = _SUB if block_rows % _SUB == 0 else block_rows

    kernel = functools.partial(
        _dnn_loss_kernel,
        block_rows=block_rows, cols=cols, tiles_per_core=tiles_per_core,
        rows_valid=rows, needs_mask=needs_mask, unroll=4)

    gate_bytes = (gate2_x.size * gate2_x.dtype.itemsize
                  + gate2_y.size * gate2_y.dtype.itemsize)
    cost = pl.CostEstimate(
        flops=6 * n_mel + 5 * n_gate,
        transcendentals=2 * n_gate,
        bytes_accessed=3 * mel2.size * bpe + gate_bytes
        + 3 * ncores * _SUB * _LANE * 4)

    part_shape = jax.ShapeDtypeStruct((ncores, _SUB, _LANE), jnp.float32)
    out_spec = pl.BlockSpec((None, _SUB, _LANE), lambda c, i: (c, 0, 0))
    mel_spec = pl.BlockSpec((block_rows, cols),
                            lambda c, i: (c * tiles_per_core + i, 0))

    mel_p, post_p, gate_p = pl.pallas_call(
        kernel,
        out_shape=(part_shape, part_shape, part_shape),
        grid_spec=pltpu.PrefetchScalarGridSpec(
            num_scalar_prefetch=0,
            grid=(ncores, tiles_per_core),
            in_specs=[
                mel_spec,
                pl.BlockSpec((block_rows, cols),
                             lambda c, i: (c * tiles_per_core + i, 0)),
                pl.BlockSpec((block_rows, cols),
                             lambda c, i: (c * tiles_per_core + i, 0)),
                # Gate tensors: tiny resident full-array blocks.
                pl.BlockSpec(gate2_x.shape, lambda c, i: (0, 0)),
                pl.BlockSpec(gate2_y.shape, lambda c, i: (0, 0)),
            ],
            out_specs=[out_spec, out_spec, out_spec],
            scratch_shapes=[
                pltpu.VMEM((acc_rows, cols), jnp.float32),
                pltpu.VMEM((acc_rows, cols), jnp.float32),
            ],
        ),
        compiler_params=pltpu.CompilerParams(
            dimension_semantics=("parallel", "arbitrary"),
            vmem_limit_bytes=vmem_limit,
        ),
        cost_estimate=cost,
    )(mel2, post2, tgt2, gate2_x, gate2_y)

    inv_n_mel = 1.0 / float(n_mel)
    inv_n_gate = 1.0 / float(n_gate)
    mel_loss = jnp.sum(mel_p[:, 0, 0]) * inv_n_mel
    mel_postnet_loss = jnp.sum(post_p[:, 0, 0]) * inv_n_mel
    gate_loss = jnp.sum(gate_p[:, 0, 0]) * inv_n_gate
    return mel_loss, mel_postnet_loss, gate_loss


def _reference(mel, post, gate_x, tgt, gate_y):
    ref_mel = jnp.mean((mel - tgt) ** 2)
    ref_post = jnp.mean((post - tgt) ** 2)
    ref_gate = jnp.mean(jnp.maximum(gate_x, 0.0) - gate_x * gate_y
                        + jnp.log1p(jnp.exp(-jnp.abs(gate_x))))
    return ref_mel, ref_post, ref_gate


if __name__ == "__main__":
    key = jax.random.PRNGKey(0)

    # (B, n_mels, T) configs: aligned single-tile, ragged multi-tile (masked
    # last tile), and a tiny non-128-aligned case (pad + small-tile path).
    configs = [(2, 32, 128), (3, 20, 128), (3, 5, 10)]
    for B, n_mels, T in configs:
        key, k1, k2, k3, k4, k5 = jax.random.split(key, 6)
        mel_output = jax.random.normal(k1, (B, n_mels, T), jnp.float32)
        mel_output_postnet = jax.random.normal(k2, (B, n_mels, T), jnp.float32)
        mel_target = jax.random.normal(k3, (B, n_mels, T), jnp.float32)
        gate_output = jax.random.normal(k4, (B, T), jnp.float32)
        gate_target = (jax.random.uniform(k5, (B, T)) > 0.5).astype(jnp.float32)

        out = dnn_loss(mel_output, mel_output_postnet, gate_output,
                       mel_target, gate_target)
        jax.block_until_ready(out)
        mel_loss, mel_postnet_loss, gate_loss = out

        ref_mel, ref_post, ref_gate = _reference(
            mel_output, mel_output_postnet, gate_output, mel_target, gate_target)
        assert jnp.allclose(mel_loss, ref_mel, rtol=1e-5, atol=1e-5)
        assert jnp.allclose(mel_postnet_loss, ref_post, rtol=1e-5, atol=1e-5)
        assert jnp.allclose(gate_loss, ref_gate, rtol=1e-5, atol=1e-5)

    print("KERNEL_OK")
</pallas_src>

<mosaic_0001>
module attributes {stable_mosaic.version = 11 : i64} {
  func.func @_dnn_loss_kernel(%arg0: i32, %arg1: i32, %arg2: memref<8x1024xf32, #tpu.memory_space<vmem>>, %arg3: memref<8x1024xf32, #tpu.memory_space<vmem>>, %arg4: memref<8x1024xf32, #tpu.memory_space<vmem>>, %arg5: memref<2x128xf32, #tpu.memory_space<vmem>>, %arg6: memref<2x128xf32, #tpu.memory_space<vmem>>, %arg7: memref<1x8x128xf32, #tpu.memory_space<vmem>>, %arg8: memref<1x8x128xf32, #tpu.memory_space<vmem>>, %arg9: memref<1x8x128xf32, #tpu.memory_space<vmem>>, %arg10: memref<8x1024xf32, #tpu.memory_space<vmem>>, %arg11: memref<8x1024xf32, #tpu.memory_space<vmem>>) attributes {dimension_semantics = [#tpu.dimension_semantics<parallel>, #tpu.dimension_semantics<arbitrary>], iteration_bounds = array<i64: 1, 1>, scalar_prefetch = 0 : i64, scratch_operands = 2 : i64, tpu.core_type = #tpu.core_type<tc>, window_params = [{transform_indices = @transform_0, window_bounds = array<i64: 8, 1024>}, {transform_indices = @transform_1, window_bounds = array<i64: 8, 1024>}, {transform_indices = @transform_2, window_bounds = array<i64: 8, 1024>}, {pipeline_mode = #tpu.pipeline_mode<synchronous>, transform_indices = @transform_3, window_bounds = array<i64: 2, 128>}, {pipeline_mode = #tpu.pipeline_mode<synchronous>, transform_indices = @transform_4, window_bounds = array<i64: 2, 128>}, {transform_indices = @transform_5, window_bounds = array<i64: 1, 8, 128>}, {transform_indices = @transform_6, window_bounds = array<i64: 1, 8, 128>}, {transform_indices = @transform_7, window_bounds = array<i64: 1, 8, 128>}]} {
    %c0_i32 = arith.constant 0 : i32
    %0 = arith.cmpi eq, %arg1, %c0_i32 : i32
    %1 = arith.extui %0 : i1 to i32
    %c0_i32_0 = arith.constant 0 : i32
    %2 = arith.cmpi ne, %1, %c0_i32_0 : i32
    scf.if %2 {
      %cst_14 = arith.constant 0.000000e+00 : f32
      %27 = vector.broadcast %cst_14 : f32 to vector<8x1024xf32>
      %c0_15 = arith.constant 0 : index
      %c0_16 = arith.constant 0 : index
      %28 = vector.load %arg10[%c0_15, %c0_16] : memref<8x1024xf32, #tpu.memory_space<vmem>>, vector<8x1024xf32>
      tpu.vector_store %arg10[%c0_15, %c0_16], %27 {strides = array<i32>} : memref<8x1024xf32, #tpu.memory_space<vmem>>, vector<8x1024xf32>,
      %cst_17 = arith.constant 0.000000e+00 : f32
      %29 = vector.broadcast %cst_17 : f32 to vector<8x1024xf32>
      %c0_18 = arith.constant 0 : index
      %c0_19 = arith.constant 0 : index
      %30 = vector.load %arg11[%c0_18, %c0_19] : memref<8x1024xf32, #tpu.memory_space<vmem>>, vector<8x1024xf32>
      tpu.vector_store %arg11[%c0_18, %c0_19], %29 {strides = array<i32>} : memref<8x1024xf32, #tpu.memory_space<vmem>>, vector<8x1024xf32>,
    } else {
    }
    %cst = arith.constant 0.000000e+00 : f32
    %3 = vector.broadcast %cst : f32 to vector<8x1024xf32>
    %c0_i32_1 = arith.constant 0 : i32
    %c8_i32 = arith.constant 8 : i32
    %4 = arith.muli %c0_i32_1, %c8_i32 : i32
    %5 = tpu.assume_multiple %4, 8 : i32
    %6 = arith.index_cast %5 : i32 to index
    %c0 = arith.constant 0 : index
    %7 = vector.load %arg4[%6, %c0] : memref<8x1024xf32, #tpu.memory_space<vmem>>, vector<8x1024xf32>
    %8 = arith.index_cast %5 : i32 to index
    %c0_2 = arith.constant 0 : index
    %9 = vector.load %arg2[%8, %c0_2] : memref<8x1024xf32, #tpu.memory_space<vmem>>, vector<8x1024xf32>
    %10 = arith.subf %9, %7 : vector<8x1024xf32>
    %11 = arith.index_cast %5 : i32 to index
    %c0_3 = arith.constant 0 : index
    %12 = vector.load %arg3[%11, %c0_3] : memref<8x1024xf32, #tpu.memory_space<vmem>>, vector<8x1024xf32>
    %13 = arith.subf %12, %7 : vector<8x1024xf32>
    %14 = arith.mulf %10, %10 : vector<8x1024xf32>
    %15 = arith.mulf %13, %13 : vector<8x1024xf32>
    %16 = arith.addf %3, %14 : vector<8x1024xf32>
    %17 = arith.addf %3, %15 : vector<8x1024xf32>
    %c1_i32 = arith.constant 1 : i32
    %c0_4 = arith.constant 0 : index
    %c0_5 = arith.constant 0 : index
    %18 = vector.load %arg10[%c0_4, %c0_5] : memref<8x1024xf32, #tpu.memory_space<vmem>>, vector<8x1024xf32>
    %19 = arith.addf %18, %16 : vector<8x1024xf32>
    %c0_6 = arith.constant 0 : index
    %c0_7 = arith.constant 0 : index
    %20 = vector.load %arg10[%c0_6, %c0_7] : memref<8x1024xf32, #tpu.memory_space<vmem>>, vector<8x1024xf32>
    tpu.vector_store %arg10[%c0_6, %c0_7], %19 {strides = array<i32>} : memref<8x1024xf32, #tpu.memory_space<vmem>>, vector<8x1024xf32>,
    %c0_8 = arith.constant 0 : index
    %c0_9 = arith.constant 0 : index
    %21 = vector.load %arg11[%c0_8, %c0_9] : memref<8x1024xf32, #tpu.memory_space<vmem>>, vector<8x1024xf32>
    %22 = arith.addf %21, %17 : vector<8x1024xf32>
    %c0_10 = arith.constant 0 : index
    %c0_11 = arith.constant 0 : index
    %23 = vector.load %arg11[%c0_10, %c0_11] : memref<8x1024xf32, #tpu.memory_space<vmem>>, vector<8x1024xf32>
    tpu.vector_store %arg11[%c0_10, %c0_11], %22 {strides = array<i32>} : memref<8x1024xf32, #tpu.memory_space<vmem>>, vector<8x1024xf32>,
    %c0_i32_12 = arith.constant 0 : i32
    %24 = arith.cmpi eq, %arg1, %c0_i32_12 : i32
    %25 = arith.extui %24 : i1 to i32
    %c0_i32_13 = arith.constant 0 : i32
    %26 = arith.cmpi ne, %25, %c0_i32_13 : i32
    scf.if %26 {
      %c0_14 = arith.constant 0 : index
      %c0_15 = arith.constant 0 : index
      %27 = vector.load %arg10[%c0_14, %c0_15] : memref<8x1024xf32, #tpu.memory_space<vmem>>, vector<8x1024xf32>
      %28 = vector.shape_cast %27 : vector<8x1024xf32> to vector<1x8x1024xf32>
      %cst_16 = arith.constant dense<0.000000e+00> : vector<1xf32>
      %29 = vector.multi_reduction <add>, %28, %cst_16 [1, 2] : vector<1x8x1024xf32> to vector<1xf32>
      %30 = vector.shape_cast %29 : vector<1xf32> to vector<1x1x1xf32>
      %31 = vector.extract %30[0, 0, 0] : f32 from vector<1x1x1xf32>
      %32 = vector.broadcast %31 : f32 to vector<8x128xf32>
      %c0_17 = arith.constant 0 : index
      %c0_18 = arith.constant 0 : index
      %c0_19 = arith.constant 0 : index
      %33 = vector.load %arg7[%c0_17, %c0_18, %c0_19] : memref<1x8x128xf32, #tpu.memory_space<vmem>>, vector<1x8x128xf32>
      %34 = vector.shape_cast %33 : vector<1x8x128xf32> to vector<8x128xf32>
      %35 = vector.shape_cast %32 : vector<8x128xf32> to vector<1x8x128xf32>
      tpu.vector_store %arg7[%c0_17, %c0_18, %c0_19], %35 {strides = array<i32>} : memref<1x8x128xf32, #tpu.memory_space<vmem>>, vector<1x8x128xf32>,
      %c0_20 = arith.constant 0 : index
      %c0_21 = arith.constant 0 : index
      %36 = vector.load %arg11[%c0_20, %c0_21] : memref<8x1024xf32, #tpu.memory_space<vmem>>, vector<8x1024xf32>
      %37 = vector.shape_cast %36 : vector<8x1024xf32> to vector<1x8x1024xf32>
      %cst_22 = arith.constant dense<0.000000e+00> : vector<1xf32>
      %38 = vector.multi_reduction <add>, %37, %cst_22 [1, 2] : vector<1x8x1024xf32> to vector<1xf32>
      %39 = vector.shape_cast %38 : vector<1xf32> to vector<1x1x1xf32>
      %40 = vector.extract %39[0, 0, 0] : f32 from vector<1x1x1xf32>
      %41 = vector.broadcast %40 : f32 to vector<8x128xf32>
      %c0_23 = arith.constant 0 : index
      %c0_24 = arith.constant 0 : index
      %c0_25 = arith.constant 0 : index
      %42 = vector.load %arg8[%c0_23, %c0_24, %c0_25] : memref<1x8x128xf32, #tpu.memory_space<vmem>>, vector<1x8x128xf32>
      %43 = vector.shape_cast %42 : vector<1x8x128xf32> to vector<8x128xf32>
      %44 = vector.shape_cast %41 : vector<8x128xf32> to vector<1x8x128xf32>
      tpu.vector_store %arg8[%c0_23, %c0_24, %c0_25], %44 {strides = array<i32>} : memref<1x8x128xf32, #tpu.memory_space<vmem>>, vector<1x8x128xf32>,
      %c0_26 = arith.constant 0 : index
      %c0_27 = arith.constant 0 : index
      %45 = vector.load %arg5[%c0_26, %c0_27] : memref<2x128xf32, #tpu.memory_space<vmem>>, vector<2x128xf32>
      %c0_28 = arith.constant 0 : index
      %c0_29 = arith.constant 0 : index
      %46 = vector.load %arg6[%c0_28, %c0_29] : memref<2x128xf32, #tpu.memory_space<vmem>>, vector<2x128xf32>
      %cst_30 = arith.constant 0.000000e+00 : f32
      %47 = vector.broadcast %cst_30 : f32 to vector<2x128xf32>
      %48 = arith.maximumf %45, %47 : vector<2x128xf32>
      %49 = arith.mulf %45, %46 : vector<2x128xf32>
      %50 = arith.subf %48, %49 : vector<2x128xf32>
      %51 = math.absf %45 : vector<2x128xf32>
      %cst_31 = arith.constant 0.000000e+00 : f32
      %52 = vector.broadcast %cst_31 : f32 to vector<2x128xf32>
      %53 = arith.subf %52, %51 : vector<2x128xf32>
      %54 = math.exp %53 : vector<2x128xf32>
      %55 = math.log1p %54 : vector<2x128xf32>
      %56 = arith.addf %50, %55 : vector<2x128xf32>
      %c0_i32_32 = arith.constant 0 : i32
      %57 = arith.cmpi eq, %arg0, %c0_i32_32 : i32
      %58 = vector.shape_cast %56 : vector<2x128xf32> to vector<1x2x128xf32>
      %cst_33 = arith.constant dense<0.000000e+00> : vector<1xf32>
      %59 = vector.multi_reduction <add>, %58, %cst_33 [1, 2] : vector<1x2x128xf32> to vector<1xf32>
      %60 = vector.shape_cast %59 : vector<1xf32> to vector<1x1x1xf32>
      %61 = vector.extract %60[0, 0, 0] : f32 from vector<1x1x1xf32>
      %cst_34 = arith.constant 0.000000e+00 : f32
      %62 = arith.select %57, %61, %cst_34 : f32
      %63 = vector.broadcast %62 : f32 to vector<8x128xf32>
      %c0_35 = arith.constant 0 : index
      %c0_36 = arith.constant 0 : index
      %c0_37 = arith.constant 0 : index
      %64 = vector.load %arg9[%c0_35, %c0_36, %c0_37] : memref<1x8x128xf32, #tpu.memory_space<vmem>>, vector<1x8x128xf32>
      %65 = vector.shape_cast %64 : vector<1x8x128xf32> to vector<8x128xf32>
      %66 = vector.shape_cast %63 : vector<8x128xf32> to vector<1x8x128xf32>
      tpu.vector_store %arg9[%c0_35, %c0_36, %c0_37], %66 {strides = array<i32>} : memref<1x8x128xf32, #tpu.memory_space<vmem>>, vector<1x8x128xf32>,
    } else {
    }
    return
  }
  func.func @transform_0(%arg0: i32, %arg1: i32) -> (i32, i32) {
    %c1_i32 = arith.constant 1 : i32
    %0 = arith.muli %arg0, %c1_i32 : i32
    %1 = arith.addi %0, %arg1 : i32
    %c0_i32 = arith.constant 0 : i32
    %c0_i32_0 = arith.constant 0 : i32
    return %1, %c0_i32 : i32, i32
  }
  func.func @transform_1(%arg0: i32, %arg1: i32) -> (i32, i32) {
    %c1_i32 = arith.constant 1 : i32
    %0 = arith.muli %arg0, %c1_i32 : i32
    %1 = arith.addi %0, %arg1 : i32
    %c0_i32 = arith.constant 0 : i32
    %c0_i32_0 = arith.constant 0 : i32
    return %1, %c0_i32 : i32, i32
  }
  func.func @transform_2(%arg0: i32, %arg1: i32) -> (i32, i32) {
    %c1_i32 = arith.constant 1 : i32
    %0 = arith.muli %arg0, %c1_i32 : i32
    %1 = arith.addi %0, %arg1 : i32
    %c0_i32 = arith.constant 0 : i32
    %c0_i32_0 = arith.constant 0 : i32
    return %1, %c0_i32 : i32, i32
  }
  func.func @transform_3(%arg0: i32, %arg1: i32) -> (i32, i32) {
    %c0_i32 = arith.constant 0 : i32
    %c0_i32_0 = arith.constant 0 : i32
    %c0_i32_1 = arith.constant 0 : i32
    return %c0_i32, %c0_i32_0 : i32, i32
  }
  func.func @transform_4(%arg0: i32, %arg1: i32) -> (i32, i32) {
    %c0_i32 = arith.constant 0 : i32
    %c0_i32_0 = arith.constant 0 : i32
    %c0_i32_1 = arith.constant 0 : i32
    return %c0_i32, %c0_i32_0 : i32, i32
  }
  func.func @transform_5(%arg0: i32, %arg1: i32) -> (i32, i32, i32) {
    %c0_i32 = arith.constant 0 : i32
    %c0_i32_0 = arith.constant 0 : i32
    %c0_i32_1 = arith.constant 0 : i32
    return %arg0, %c0_i32, %c0_i32_0 : i32, i32, i32
  }
  func.func @transform_6(%arg0: i32, %arg1: i32) -> (i32, i32, i32) {
    %c0_i32 = arith.constant 0 : i32
    %c0_i32_0 = arith.constant 0 : i32
    %c0_i32_1 = arith.constant 0 : i32
    return %arg0, %c0_i32, %c0_i32_0 : i32, i32, i32
  }
  func.func @transform_7(%arg0: i32, %arg1: i32) -> (i32, i32, i32) {
    %c0_i32 = arith.constant 0 : i32
    %c0_i32_0 = arith.constant 0 : i32
    %c0_i32_1 = arith.constant 0 : i32
    return %arg0, %c0_i32, %c0_i32_0 : i32, i32, i32
  }
}

</mosaic_0001>

<llo_original>
// kernel: dnn_loss.1
$region0: #{dnn_loss.1}
  #allocation0 [shape = 'u32[]', space=smem, size = 0x4, offset = 0x4, fixed_abs, tag = 'smem constant byte address 0x4 - core index']
  #allocation1 [shape = 'u32[144,128]{1,0:T(1,128)}', space=vmem, size = 0x12000, scoped, tag = 'internal scratch']
  #allocation2 [shape = 'f32[8,1024]{1,0:T(8,128)}', space=vmem, size = 0x8000, scoped, tag = 'scratch operand']
  #allocation3 [shape = 'f32[8,1024]{1,0:T(8,128)}', space=vmem, size = 0x8000, scoped, tag = 'scratch operand']
  %s0 = inlined_call_operand.vmem [shape: f32[8,1024], index: 0, kind: input, shape index: {}]
  %s1 = inlined_call_operand.vmem [shape: f32[8,1024], index: 1, kind: input, shape index: {}]
  %s2 = inlined_call_operand.vmem [shape: f32[8,1024], index: 2, kind: input, shape index: {}]
  %s3 = inlined_call_operand.vmem [shape: f32[2,128], index: 3, kind: input, shape index: {}]
  %s4 = inlined_call_operand.vmem [shape: f32[2,128], index: 4, kind: input, shape index: {}]
  %s5 = inlined_call_operand.vmem [shape: f32[1,8,128], index: 5, kind: output, shape index: {0}]
  %s6 = inlined_call_operand.vmem [shape: f32[1,8,128], index: 6, kind: output, shape index: {1}]
  %s7 = inlined_call_operand.vmem [shape: f32[1,8,128], index: 7, kind: output, shape index: {2}]
  %8 = xla_tuple %s5, %s6, %s7
  %s9 = sld [smem:[#allocation0]]
  $region54: #{dnn_loss.1} parent=0
    _
  %s11 = ssub.s32 1, %s9
  %s12 = scalar_select 0, %s11, %s9
  // Predicated region
  $region2: #{dnn_loss.1} parent=0 // pred_check
    _
  $region3: #{dnn_loss.1} parent=0 // pred_check_branch
    %14 = sbr.rel (0) target = $region5
  $region4: #{dnn_loss.1} parent=0 // pred_region
    %s15 = sadd.s32 0, 0
    %p16 = scmp.lt.s32.totalorder %s15, 0
    %s17 = scalar_select %p16, %s15, 0
    %s18 = smul.addr %s17, 8
    %s19 = smul.addr %s18, 8
    %s20 = scalar_lea.vmem %s0, %s19
    %s21 = sadd.s32 0, 0
  $region5: #{dnn_loss.1} parent=0 // pred_fallthru
    _
  // Predicated region
  $region6: #{dnn_loss.1} parent=0 // pred_check
    _
  $region7: #{dnn_loss.1} parent=0 // pred_check_branch
    %23 = sbr.rel (0) target = $region9
  $region8: #{dnn_loss.1} parent=0 // pred_region
    %s24 = sadd.s32 0, 0
    %p25 = scmp.lt.s32.totalorder %s24, 0
    %s26 = scalar_select %p25, %s24, 0
    %s27 = smul.addr %s26, 8
    %s28 = smul.addr %s27, 8
    %s29 = scalar_lea.vmem %s1, %s28
    %s30 = sadd.s32 0, 0
  $region9: #{dnn_loss.1} parent=0 // pred_fallthru
    _
  // Predicated region
  $region10: #{dnn_loss.1} parent=0 // pred_check
    _
  $region11: #{dnn_loss.1} parent=0 // pred_check_branch
    %32 = sbr.rel (0) target = $region13
  $region12: #{dnn_loss.1} parent=0 // pred_region
    %s33 = sadd.s32 0, 0
    %p34 = scmp.lt.s32.totalorder %s33, 0
    %s35 = scalar_select %p34, %s33, 0
    %s36 = smul.addr %s35, 8
    %s37 = smul.addr %s36, 8
    %s38 = scalar_lea.vmem %s2, %s37
    %s39 = sadd.s32 0, 0
  $region13: #{dnn_loss.1} parent=0 // pred_fallthru
    _
  // Predicated region
  $region14: #{dnn_loss.1} parent=0 // pred_check
    _
  $region15: #{dnn_loss.1} parent=0 // pred_check_branch
    %41 = sbr.rel (0) target = $region17
  $region16: #{dnn_loss.1} parent=0 // pred_region
    _
  $region17: #{dnn_loss.1} parent=0 // pred_fallthru
    _
  // Predicated region
  $region18: #{dnn_loss.1} parent=0 // pred_check
    _
  $region19: #{dnn_loss.1} parent=0 // pred_check_branch
    %43 = sbr.rel (0) target = $region21
  $region20: #{dnn_loss.1} parent=0 // pred_region
    _
  $region21: #{dnn_loss.1} parent=0 // pred_fallthru
    _
  %s44 = sadd.s32 0, 0
  %p45 = scmp.lt.s32.totalorder %s44, 0
  %s46 = scalar_select %p45, %s44, 0
  %s47 = smul.addr %s46, 8
  %s48 = smul.addr %s47, 8
  %s49 = scalar_lea.vmem %s0, %s48
  %s50 = sadd.s32 0, 0
  %p51 = scmp.lt.s32.totalorder %s50, 0
  %s52 = scalar_select %p51, %s50, 0
  %s53 = smul.addr %s52, 8
  %s54 = smul.addr %s53, 8
  %s55 = scalar_lea.vmem %s1, %s54
  %s56 = sadd.s32 0, 0
  %p57 = scmp.lt.s32.totalorder %s56, 0
  %s58 = scalar_select %p57, %s56, 0
  %s59 = smul.addr %s58, 8
  %s60 = smul.addr %s59, 8
  %s61 = scalar_lea.vmem %s2, %s60
  %s62 = sadd.s32 0, 0
  %p63 = scmp.lt.s32.totalorder %s62, 0
  %s64 = scalar_select %p63, %s62, 0
  %s65 = smul.addr %s64, 8
  %s66 = smul.addr %s65, 8
  %s67 = scalar_lea.vmem %s0, %s66
  %s68 = sadd.s32 0, 0
  %s69 = sadd.s32 0, 0
  %p70 = scmp.lt.s32.totalorder %s69, 0
  %s71 = scalar_select %p70, %s69, 0
  %s72 = smul.addr %s71, 8
  %s73 = smul.addr %s72, 8
  %s74 = scalar_lea.vmem %s1, %s73
  %s75 = sadd.s32 0, 0
  %s76 = sadd.s32 0, 0
  %p77 = scmp.lt.s32.totalorder %s76, 0
  %s78 = scalar_select %p77, %s76, 0
  %s79 = smul.addr %s78, 8
  %s80 = smul.addr %s79, 8
  %s81 = scalar_lea.vmem %s2, %s80
  %s82 = sadd.s32 0, 0
  %p83 = scmp.eq.s32.totalorder 0, 0
  // Predicated region
  $region22: #{dnn_loss.1} parent=0 // pred_check
    %p84 = pneg %p83
  $region23: #{dnn_loss.1} parent=0 // pred_check_branch
    %86 = sbr.rel (%p84) target = $region25
  $region24: #{dnn_loss.1} parent=0 // pred_region
    %87 = vst [vmem:[#allocation2] sm:$0xff] 0.0
    %88 = vst [vmem:[#allocation2 + $0x8] sm:$0xff] 0.0
    %89 = vst [vmem:[#allocation2 + $0x10] sm:$0xff] 0.0
    %90 = vst [vmem:[#allocation2 + $0x18] sm:$0xff] 0.0
    %91 = vst [vmem:[#allocation2 + $0x20] sm:$0xff] 0.0
    %92 = vst [vmem:[#allocation2 + $0x28] sm:$0xff] 0.0
    %93 = vst [vmem:[#allocation2 + $0x30] sm:$0xff] 0.0
    %94 = vst [vmem:[#allocation2 + $0x38] sm:$0xff] 0.0
    %95 = vst [vmem:[#allocation3] sm:$0xff] 0.0
    %96 = vst [vmem:[#allocation3 + $0x8] sm:$0xff] 0.0
    %97 = vst [vmem:[#allocation3 + $0x10] sm:$0xff] 0.0
    %98 = vst [vmem:[#allocation3 + $0x18] sm:$0xff] 0.0
    %99 = vst [vmem:[#allocation3 + $0x20] sm:$0xff] 0.0
    %100 = vst [vmem:[#allocation3 + $0x28] sm:$0xff] 0.0
    %101 = vst [vmem:[#allocation3 + $0x30] sm:$0xff] 0.0
    %102 = vst [vmem:[#allocation3 + $0x38] sm:$0xff] 0.0
  $region25: #{dnn_loss.1} parent=0 // pred_fallthru
    _
  %s103 = smul.u32 0, 8
  %s104 = smul.addr %s103, 8
  %s105 = scalar_lea.vmem %s81, %s104
  %v106 = vld [vmem:[%s105] sm:$0xff]
  %v107 = vld [vmem:[%s105 + $0x8] sm:$0xff]
  %v108 = vld [vmem:[%s105 + $0x10] sm:$0xff]
  %v109 = vld [vmem:[%s105 + $0x18] sm:$0xff]
  %v110 = vld [vmem:[%s105 + $0x20] sm:$0xff]
  %v111 = vld [vmem:[%s105 + $0x28] sm:$0xff]
  %v112 = vld [vmem:[%s105 + $0x30] sm:$0xff]
  %v113 = vld [vmem:[%s105 + $0x38] sm:$0xff]
  %s114 = smul.addr %s103, 8
  %s115 = scalar_lea.vmem %s67, %s114
  %v116 = vld [vmem:[%s115] sm:$0xff]
  %v117 = vld [vmem:[%s115 + $0x8] sm:$0xff]
  %v118 = vld [vmem:[%s115 + $0x10] sm:$0xff]
  %v119 = vld [vmem:[%s115 + $0x18] sm:$0xff]
  %v120 = vld [vmem:[%s115 + $0x20] sm:$0xff]
  %v121 = vld [vmem:[%s115 + $0x28] sm:$0xff]
  %v122 = vld [vmem:[%s115 + $0x30] sm:$0xff]
  %v123 = vld [vmem:[%s115 + $0x38] sm:$0xff]
  %v124 = vsub.f32 %v116, %v106
  %v125 = vsub.f32 %v117, %v107
  %v126 = vsub.f32 %v118, %v108
  %v127 = vsub.f32 %v119, %v109
  %v128 = vsub.f32 %v120, %v110
  %v129 = vsub.f32 %v121, %v111
  %v130 = vsub.f32 %v122, %v112
  %v131 = vsub.f32 %v123, %v113
  %s132 = smul.addr %s103, 8
  %s133 = scalar_lea.vmem %s74, %s132
  %v134 = vld [vmem:[%s133] sm:$0xff]
  %v135 = vld [vmem:[%s133 + $0x8] sm:$0xff]
  %v136 = vld [vmem:[%s133 + $0x10] sm:$0xff]
  %v137 = vld [vmem:[%s133 + $0x18] sm:$0xff]
  %v138 = vld [vmem:[%s133 + $0x20] sm:$0xff]
  %v139 = vld [vmem:[%s133 + $0x28] sm:$0xff]
  %v140 = vld [vmem:[%s133 + $0x30] sm:$0xff]
  %v141 = vld [vmem:[%s133 + $0x38] sm:$0xff]
  %v142 = vsub.f32 %v134, %v106
  %v143 = vsub.f32 %v135, %v107
  %v144 = vsub.f32 %v136, %v108
  %v145 = vsub.f32 %v137, %v109
  %v146 = vsub.f32 %v138, %v110
  %v147 = vsub.f32 %v139, %v111
  %v148 = vsub.f32 %v140, %v112
  %v149 = vsub.f32 %v141, %v113
  %v150 = vmul.f32 %v124, %v124
  %v151 = vmul.f32 %v125, %v125
  %v152 = vmul.f32 %v126, %v126
  %v153 = vmul.f32 %v127, %v127
  %v154 = vmul.f32 %v128, %v128
  %v155 = vmul.f32 %v129, %v129
  %v156 = vmul.f32 %v130, %v130
  %v157 = vmul.f32 %v131, %v131
  %v158 = vmul.f32 %v142, %v142
  %v159 = vmul.f32 %v143, %v143
  %v160 = vmul.f32 %v144, %v144
  %v161 = vmul.f32 %v145, %v145
  %v162 = vmul.f32 %v146, %v146
  %v163 = vmul.f32 %v147, %v147
  %v164 = vmul.f32 %v148, %v148
  %v165 = vmul.f32 %v149, %v149
  %v166 = vadd.f32 %v150, 0.0
  %v167 = vadd.f32 %v151, 0.0
  %v168 = vadd.f32 %v152, 0.0
  %v169 = vadd.f32 %v153, 0.0
  %v170 = vadd.f32 %v154, 0.0
  %v171 = vadd.f32 %v155, 0.0
  %v172 = vadd.f32 %v156, 0.0
  %v173 = vadd.f32 %v157, 0.0
  %v174 = vadd.f32 %v158, 0.0
  %v175 = vadd.f32 %v159, 0.0
  %v176 = vadd.f32 %v160, 0.0
  %v177 = vadd.f32 %v161, 0.0
  %v178 = vadd.f32 %v162, 0.0
  %v179 = vadd.f32 %v163, 0.0
  %v180 = vadd.f32 %v164, 0.0
  %v181 = vadd.f32 %v165, 0.0
  %v182 = vld [vmem:[#allocation2] sm:$0xff]
  %v183 = vld [vmem:[#allocation2 + $0x8] sm:$0xff]
  %v184 = vld [vmem:[#allocation2 + $0x10] sm:$0xff]
  %v185 = vld [vmem:[#allocation2 + $0x18] sm:$0xff]
  %v186 = vld [vmem:[#allocation2 + $0x20] sm:$0xff]
  %v187 = vld [vmem:[#allocation2 + $0x28] sm:$0xff]
  %v188 = vld [vmem:[#allocation2 + $0x30] sm:$0xff]
  %v189 = vld [vmem:[#allocation2 + $0x38] sm:$0xff]
  %v190 = vadd.f32 %v182, %v166
  %v191 = vadd.f32 %v183, %v167
  %v192 = vadd.f32 %v184, %v168
  %v193 = vadd.f32 %v185, %v169
  %v194 = vadd.f32 %v186, %v170
  %v195 = vadd.f32 %v187, %v171
  %v196 = vadd.f32 %v188, %v172
  %v197 = vadd.f32 %v189, %v173
  %198 = vst [vmem:[#allocation2] sm:$0xff] %v190
  %199 = vst [vmem:[#allocation2 + $0x8] sm:$0xff] %v191
  %200 = vst [vmem:[#allocation2 + $0x10] sm:$0xff] %v192
  %201 = vst [vmem:[#allocation2 + $0x18] sm:$0xff] %v193
  %202 = vst [vmem:[#allocation2 + $0x20] sm:$0xff] %v194
  %203 = vst [vmem:[#allocation2 + $0x28] sm:$0xff] %v195
  %204 = vst [vmem:[#allocation2 + $0x30] sm:$0xff] %v196
  %205 = vst [vmem:[#allocation2 + $0x38] sm:$0xff] %v197
  %v206 = vld [vmem:[#allocation3] sm:$0xff]
  %v207 = vld [vmem:[#allocation3 + $0x8] sm:$0xff]
  %v208 = vld [vmem:[#allocation3 + $0x10] sm:$0xff]
  %v209 = vld [vmem:[#allocation3 + $0x18] sm:$0xff]
  %v210 = vld [vmem:[#allocation3 + $0x20] sm:$0xff]
  %v211 = vld [vmem:[#allocation3 + $0x28] sm:$0xff]
  %v212 = vld [vmem:[#allocation3 + $0x30] sm:$0xff]
  %v213 = vld [vmem:[#allocation3 + $0x38] sm:$0xff]
  %v214 = vadd.f32 %v206, %v174
  %v215 = vadd.f32 %v207, %v175
  %v216 = vadd.f32 %v208, %v176
  %v217 = vadd.f32 %v209, %v177
  %v218 = vadd.f32 %v210, %v178
  %v219 = vadd.f32 %v211, %v179
  %v220 = vadd.f32 %v212, %v180
  %v221 = vadd.f32 %v213, %v181
  %222 = vst [vmem:[#allocation3] sm:$0xff] %v214
  %223 = vst [vmem:[#allocation3 + $0x8] sm:$0xff] %v215
  %224 = vst [vmem:[#allocation3 + $0x10] sm:$0xff] %v216
  %225 = vst [vmem:[#allocation3 + $0x18] sm:$0xff] %v217
  %226 = vst [vmem:[#allocation3 + $0x20] sm:$0xff] %v218
  %227 = vst [vmem:[#allocation3 + $0x28] sm:$0xff] %v219
  %228 = vst [vmem:[#allocation3 + $0x30] sm:$0xff] %v220
  %229 = vst [vmem:[#allocation3 + $0x38] sm:$0xff] %v221
  // Predicated region
  $region26: #{dnn_loss.1} parent=0 // pred_check
    %p230 = pneg %p83
  $region27: #{dnn_loss.1} parent=0 // pred_check_branch
    %232 = sbr.rel (%p230) target = $region29
  $region28: #{dnn_loss.1} parent=0 // pred_region
    %v233 = vld [vmem:[#allocation2] sm:$0xff]
    %v234 = vld [vmem:[#allocation2 + $0x8] sm:$0xff]
    %v235 = vld [vmem:[#allocation2 + $0x10] sm:$0xff]
    %v236 = vld [vmem:[#allocation2 + $0x18] sm:$0xff]
    %v237 = vld [vmem:[#allocation2 + $0x20] sm:$0xff]
    %v238 = vld [vmem:[#allocation2 + $0x28] sm:$0xff]
    %v239 = vld [vmem:[#allocation2 + $0x30] sm:$0xff]
    %v240 = vld [vmem:[#allocation2 + $0x38] sm:$0xff]
    %v241 = vadd.f32 %v233, %v234
    %v242 = vadd.f32 %v241, %v235
    %v243 = vadd.f32 %v242, %v236
    %v244 = vadd.f32 %v243, %v237
    %v245 = vadd.f32 %v244, %v238
    %v246 = vadd.f32 %v245, %v239
    %v247 = vadd.f32 %v246, %v240
    %248 = vadd.xlane.f32.xlu0 %v247
    %v249 = vpop.xlane.xlu0 %248
    %v250 = vrot.slane %v249, 4
    %v251 = vadd.f32 %v249, %v250
    %v252 = vrot.slane %v251, 2
    %v253 = vadd.f32 %v251, %v252
    %v254 = vrot.slane %v253, 1
    %v255 = vadd.f32 %v253, %v254
    %s256 = vtos %v255
    %v257 = vstv %s256
    %258 = vst [vmem:[%s5] sm:$0xff] %v257
    %v259 = vld [vmem:[#allocation3] sm:$0xff]
    %v260 = vld [vmem:[#allocation3 + $0x8] sm:$0xff]
    %v261 = vld [vmem:[#allocation3 + $0x10] sm:$0xff]
    %v262 = vld [vmem:[#allocation3 + $0x18] sm:$0xff]
    %v263 = vld [vmem:[#allocation3 + $0x20] sm:$0xff]
    %v264 = vld [vmem:[#allocation3 + $0x28] sm:$0xff]
    %v265 = vld [vmem:[#allocation3 + $0x30] sm:$0xff]
    %v266 = vld [vmem:[#allocation3 + $0x38] sm:$0xff]
    %v267 = vadd.f32 %v259, %v260
    %v268 = vadd.f32 %v267, %v261
    %v269 = vadd.f32 %v268, %v262
    %v270 = vadd.f32 %v269, %v263
    %v271 = vadd.f32 %v270, %v264
    %v272 = vadd.f32 %v271, %v265
    %v273 = vadd.f32 %v272, %v266
    %274 = vadd.xlane.f32.xlu0 %v273
    %v275 = vpop.xlane.xlu0 %274
    %v276 = vrot.slane %v275, 4
    %v277 = vadd.f32 %v275, %v276
    %v278 = vrot.slane %v277, 2
    %v279 = vadd.f32 %v277, %v278
    %v280 = vrot.slane %v279, 1
    %v281 = vadd.f32 %v279, %v280
    %s282 = vtos %v281
    %v283 = vstv %s282
    %284 = vst [vmem:[%s6] sm:$0xff] %v283
    %v285 = vld [vmem:[%s3] sm:$0x3]
    %v286 = vld [vmem:[%s4] sm:$0x3]
    %v287 = vmax.f32 %v285, 0.0
    %v288 = vmul.f32 %v285, %v286
    %v289 = vsub.f32 %v287, %v288
    %v290 = vand.u32 2147483647, %v285
    %v291 = vsub.f32 0.0, %v290
    %v292 = vmul.f32 %v291, 1.442695
    %v293 = vpow.pop %v292
    %v294 = vadd.f32 %v293, 1.0
    %v295 = vlog2.pop %v294
    %v296 = vmul.f32 %v295, 0.6931472
    %v297 = vmul.f32 -0.5, %v293
    %v298 = vadd.f32 %v297, 1.0
    %v299 = vmul.f32 %v298, %v293
    %v300 = vand.u32 2147483647, %v293
    %vm301 = vcmp.lt.f32.partialorder %v300, 0.0004427343
    %v302 = vsel %vm301, %v299, %v296
    %v303 = vadd.f32 %v289, %v302
    %p304 = scmp.eq.s32.totalorder 0, 0
    %vm305 = vcmask 1041408
    %v306 = vsel %vm305, %v303, 0.0
    %307 = vadd.xlane.f32.xlu0 %v306
    %v308 = vpop.xlane.xlu0 %307
    %v309 = vrot.slane %v308, 4
    %v310 = vadd.f32 %v308, %v309
    %v311 = vrot.slane %v310, 2
    %v312 = vadd.f32 %v310, %v311
    %v313 = vrot.slane %v312, 1
    %v314 = vadd.f32 %v312, %v313
    %s315 = vtos %v314
    %s316 = scalar_select %p304, %s315, 0.0
    %v317 = vstv %s316
    %318 = vst [vmem:[%s7] sm:$0xff] %v317
  $region29: #{dnn_loss.1} parent=0 // pred_fallthru
    _
  // Predicated region
  $region30: #{dnn_loss.1} parent=0 // pred_check
    _
  $region31: #{dnn_loss.1} parent=0 // pred_check_branch
    %320 = sbr.rel (0) target = $region33
  $region32: #{dnn_loss.1} parent=0 // pred_region
    _
  $region33: #{dnn_loss.1} parent=0 // pred_fallthru
    _
  // Predicated region
  $region34: #{dnn_loss.1} parent=0 // pred_check
    _
  $region35: #{dnn_loss.1} parent=0 // pred_check_branch
    %322 = sbr.rel (0) target = $region37
  $region36: #{dnn_loss.1} parent=0 // pred_region
    _
  $region37: #{dnn_loss.1} parent=0 // pred_fallthru
    _
  // Predicated region
  $region38: #{dnn_loss.1} parent=0 // pred_check
    _
  $region39: #{dnn_loss.1} parent=0 // pred_check_branch
    %324 = sbr.rel (0) target = $region41
  $region40: #{dnn_loss.1} parent=0 // pred_region
    _
  $region41: #{dnn_loss.1} parent=0 // pred_fallthru
    _
  // Predicated region
  $region42: #{dnn_loss.1} parent=0 // pred_check
    _
  $region43: #{dnn_loss.1} parent=0 // pred_check_branch
    %326 = sbr.rel (0) target = $region45
  $region44: #{dnn_loss.1} parent=0 // pred_region
    _
  $region45: #{dnn_loss.1} parent=0 // pred_fallthru
    _
  // Predicated region
  $region46: #{dnn_loss.1} parent=0 // pred_check
    _
  $region47: #{dnn_loss.1} parent=0 // pred_check_branch
    %328 = sbr.rel (0) target = $region49
  $region48: #{dnn_loss.1} parent=0 // pred_region
    _
  $region49: #{dnn_loss.1} parent=0 // pred_fallthru
    _
  // Predicated region
  $region50: #{dnn_loss.1} parent=0 // pred_check
    _
  $region51: #{dnn_loss.1} parent=0 // pred_check_branch
    %330 = sbr.rel (0) target = $region53
  $region52: #{dnn_loss.1} parent=0 // pred_region
    _
  $region53: #{dnn_loss.1} parent=0 // pred_fallthru
    _

</llo_original>
